<compile_context>
chip_gen: v7x
topology: tpu7x:2x2x1
jax: 0.10.0
libtpu: 0.0.40
codegen_flags: <defaults>
</compile_context>

<pallas_src>
import functools

import jax
import jax.numpy as jnp
from jax.experimental import pallas as pl
from jax.experimental.pallas import tpu as pltpu


# ----------------------------------------------------------------------------
# Fused kernel: preproc + all GC blocks for one batch tile.
# ----------------------------------------------------------------------------
def fused_gnn_kernel(num_layers, tb, mxu_dtype, x_ref, p_ref, adj_ref, *rest):
    """One batch tile of the fused GNN forward.

    x_ref:   (C, TB*N, W)   raw signals; rows are (batch-in-tile, node) major
    p_ref:   (C, TB*N, W)   preproc mixing weights broadcast along W
    adj_ref: (N, N)         tanh(adjacency), pre-cast to the MXU dtype
    rest:    w0, b0, w1, b1, ..., out_ref
             w_i: (Din_i, E) MXU dtype, b_i: (1, TB*E) f32, out_ref: (N, TB*E) f32
    """
    o_ref = rest[-1]
    wb_refs = rest[:-1]
    C = x_ref.shape[0]
    N = adj_ref.shape[0]

    # TODO(synk): preproc_GNN source not provided; implemented as a learned
    # per-node linear combination over sensor channels (C-step VPU FMA, f32).
    h = x_ref[0] * p_ref[0]
    for c in range(1, C):
        h = h + x_ref[c] * p_ref[c]                       # (TB*N, W) f32

    adj = adj_ref[...]                                    # (N, N), MXU dtype

    # TODO(synk): GC_Block source not provided; implemented as
    # tanh(A @ (x @ W) + b); BatchNorm (if any) omitted, dropout = eval identity.
    for i in range(num_layers):
        w = wb_refs[2 * i][...]                           # (Din, E), MXU dtype
        b = wb_refs[2 * i + 1][...]                       # (1, TB*E) f32
        e = w.shape[1]
        support = jnp.dot(h.astype(mxu_dtype), w,
                          preferred_element_type=jnp.float32)    # (TB*N, E) f32
        if tb == 1:
            wide = support                                # (N, E)
        else:
            # Rows are batch-major, so each per-batch block is a contiguous
            # (N, E) slab; pack the slabs along lanes -> one wide MXU dot.
            wide = jnp.concatenate(
                [support[t * N:(t + 1) * N, :] for t in range(tb)], axis=1)
        y = jnp.dot(adj, wide.astype(mxu_dtype),
                    preferred_element_type=jnp.float32)          # (N, TB*E) f32
        act = jnp.tanh(y + b)                             # f32 elementwise tail
        if i + 1 < num_layers:
            if tb == 1:
                h = act
            else:
                h = jnp.concatenate(
                    [act[:, t * e:(t + 1) * e] for t in range(tb)], axis=0)
        else:
            o_ref[...] = act                              # lane-dense store


# ----------------------------------------------------------------------------
# Parameter init
# ----------------------------------------------------------------------------
def init_gnn_params(key, window_length, embedding_size, num_layers,
                    sensor_channels, num_sensors):
    keys = jax.random.split(key, 3 + 2 * num_layers)
    params = {
        "num_sensors": num_sensors,
        "sensor_channels": sensor_channels,
        "embedding_size": embedding_size,
        # learnable adjacency parameter (torch.FloatTensor(N, N))
        "adj": 0.1 * jax.random.normal(keys[0], (num_sensors, num_sensors),
                                       dtype=jnp.float32),
        # preproc_GNN mixing weights (N, C)
        "preproc_w": 0.1 * jax.random.normal(keys[1], (num_sensors, sensor_channels),
                                             dtype=jnp.float32),
        "gc_layers": [],
    }
    in_dim = window_length
    for i in range(num_layers):
        w = 0.1 * jax.random.normal(keys[2 + 2 * i], (in_dim, embedding_size),
                                    dtype=jnp.float32)
        b = 0.01 * jax.random.normal(keys[3 + 2 * i], (1, embedding_size),
                                     dtype=jnp.float32)
        params["gc_layers"].append((w, b))
        in_dim = embedding_size
    return params


# ----------------------------------------------------------------------------
# Forward wrapper
# ----------------------------------------------------------------------------
def _choose_batch_tile(B, E):
    """Batch-tile size: prefer >=2 grid steps (v7x megacore) and tb*E lanes."""
    target = max(1, -(-128 // max(E, 1)))                 # ceil(128 / E)
    divisors = [d for d in range(1, B + 1) if B % d == 0]
    cands = [d for d in divisors if d <= target and B // d >= 2]
    if not cands:
        cands = [d for d in divisors if d <= target] or [1]
    return max(cands)


def gnn_forward(x, params, *, mxu_dtype=jnp.bfloat16):
    """x: (B, 1, window_length, num_sensors*sensor_channels) float32."""
    pred = 0
    reconst = 0
    N = params["num_sensors"]
    C = params["sensor_channels"]
    E = params["embedding_size"]
    num_layers = len(params["gc_layers"])

    x = jnp.squeeze(x, axis=1)                            # (B, W, N*C)
    x = jnp.transpose(x, (0, 2, 1))                       # (B, N*C, W)
    B, _, Wlen = x.shape

    tb = _choose_batch_tile(B, E)
    G = B // tb

    # TODO(synk): assumes the flattened N*C axis is node-major (n*C + c).
    x = x.reshape(B, N, C, Wlen)
    # Rows within a batch tile are batch-major: row = t*N + n.
    x_tiles = (x.reshape(G, tb, N, C, Wlen)
                .transpose(0, 3, 1, 2, 4)
                .reshape(G, C, tb * N, Wlen))             # (G, C, TB*N, W)

    # preproc weights broadcast along W (lane axis); resident across the grid.
    p_b = jnp.broadcast_to(params["preproc_w"].T[:, None, :, None],
                           (C, tb, N, Wlen)).reshape(C, tb * N, Wlen)

    # tanh(adj) hoisted (learnable_adj=True path) and pre-cast for the MXU.
    adj_t = jnp.tanh(params["adj"]).astype(mxu_dtype)     # (N, N)

    flat_wb = []
    in_specs = [
        pl.BlockSpec((None, C, tb * N, Wlen), lambda g: (g, 0, 0, 0)),  # x tile
        pl.BlockSpec((C, tb * N, Wlen), lambda g: (0, 0, 0)),           # p resident
        pl.BlockSpec((N, N), lambda g: (0, 0)),                         # adj resident
    ]
    in_dim = Wlen
    for (w, b) in params["gc_layers"]:
        flat_wb.append(w.astype(mxu_dtype))               # (Din, E) MXU dtype
        flat_wb.append(jnp.tile(b, (1, tb)))              # (1, TB*E) f32
        in_specs.append(pl.BlockSpec((in_dim, E), lambda g: (0, 0)))
        in_specs.append(pl.BlockSpec((1, tb * E), lambda g: (0, 0)))
        in_dim = E

    out_spec = pl.BlockSpec((None, N, tb * E), lambda g: (g, 0, 0))

    # Explicit VMEM budget: double-buffered x/out tiles + resident params + slack.
    f32b = 4
    mxub = jnp.dtype(mxu_dtype).itemsize
    vmem_est = (2 * (C * tb * N * Wlen) * f32b            # x tile (2 buffers)
                + 2 * (N * tb * E) * f32b                 # out tile (2 buffers)
                + (C * tb * N * Wlen) * f32b              # p
                + N * N * mxub                            # adj
                + sum(w.size * mxub + tb * E * f32b
                      for (w, _) in params["gc_layers"])) * 2 + (1 << 20)
    vmem_limit = int(min(max(vmem_est, 16 << 20), 64 << 20))

    kernel = functools.partial(fused_gnn_kernel, num_layers, tb, mxu_dtype)
    out = pl.pallas_call(
        kernel,
        out_shape=jax.ShapeDtypeStruct((G, N, tb * E), jnp.float32),
        grid=(G,),
        in_specs=in_specs,
        out_specs=out_spec,
        compiler_params=pltpu.CompilerParams(
            dimension_semantics=("parallel",),
            vmem_limit_bytes=vmem_limit),
    )(x_tiles, p_b, adj_t, *flat_wb)

    # (G, N, TB*E) -> (B, E, N): tiny final permute left to XLA.
    embedding = (out.reshape(G, N, tb, E)
                    .transpose(0, 2, 3, 1)
                    .reshape(B, E, N))
    return embedding, pred, reconst


# ----------------------------------------------------------------------------
if __name__ == "__main__":
    # small, module-consistent shapes
    B = 2
    window_length = 16
    embedding_size = 32
    num_layers = 2
    sensor_channels = 4
    num_sensors = 8

    key = jax.random.PRNGKey(0)
    k_param, k_x = jax.random.split(key)

    params = init_gnn_params(k_param, window_length, embedding_size,
                             num_layers, sensor_channels, num_sensors)

    x = jax.random.normal(
        k_x, (B, 1, window_length, num_sensors * sensor_channels),
        dtype=jnp.float32)

    embedding, pred, reconst = gnn_forward(x, params)
    embedding = jax.block_until_ready(embedding)

    assert embedding.shape == (B, embedding_size, num_sensors), embedding.shape
    assert embedding.dtype == jnp.float32
    print("KERNEL_OK")
</pallas_src>

<mosaic_0001>
module attributes {stable_mosaic.version = 11 : i64} {
  func.func @fused_gnn_kernel(%arg0: i32, %arg1: memref<1x4x8x16xf32, #tpu.memory_space<vmem>>, %arg2: memref<4x8x16xf32, #tpu.memory_space<vmem>>, %arg3: memref<8x8xbf16, #tpu.memory_space<vmem>>, %arg4: memref<16x32xbf16, #tpu.memory_space<vmem>>, %arg5: memref<1x32xf32, #tpu.memory_space<vmem>>, %arg6: memref<32x32xbf16, #tpu.memory_space<vmem>>, %arg7: memref<1x32xf32, #tpu.memory_space<vmem>>, %arg8: memref<1x8x32xf32, #tpu.memory_space<vmem>>) attributes {dimension_semantics = [#tpu.dimension_semantics<parallel>], iteration_bounds = array<i64: 2>, scalar_prefetch = 0 : i64, scratch_operands = 0 : i64, tpu.core_type = #tpu.core_type<tc>, window_params = [{transform_indices = @transform_0, window_bounds = array<i64: 1, 4, 8, 16>}, {pipeline_mode = #tpu.pipeline_mode<synchronous>, transform_indices = @transform_1, window_bounds = array<i64: 4, 8, 16>}, {pipeline_mode = #tpu.pipeline_mode<synchronous>, transform_indices = @transform_2, window_bounds = array<i64: 8, 8>}, {pipeline_mode = #tpu.pipeline_mode<synchronous>, transform_indices = @transform_3, window_bounds = array<i64: 16, 32>}, {pipeline_mode = #tpu.pipeline_mode<synchronous>, transform_indices = @transform_4, window_bounds = array<i64: 1, 32>}, {pipeline_mode = #tpu.pipeline_mode<synchronous>, transform_indices = @transform_5, window_bounds = array<i64: 32, 32>}, {pipeline_mode = #tpu.pipeline_mode<synchronous>, transform_indices = @transform_6, window_bounds = array<i64: 1, 32>}, {transform_indices = @transform_7, window_bounds = array<i64: 1, 8, 32>}]} {
    %c0 = arith.constant 0 : index
    %c0_0 = arith.constant 0 : index
    %c0_1 = arith.constant 0 : index
    %c0_2 = arith.constant 0 : index
    %0 = vector.load %arg1[%c0, %c0_0, %c0_1, %c0_2] : memref<1x4x8x16xf32, #tpu.memory_space<vmem>>, vector<1x1x8x16xf32>
    %1 = vector.shape_cast %0 : vector<1x1x8x16xf32> to vector<8x16xf32>
    %c0_3 = arith.constant 0 : index
    %c0_4 = arith.constant 0 : index
    %c0_5 = arith.constant 0 : index
    %2 = vector.load %arg2[%c0_3, %c0_4, %c0_5] : memref<4x8x16xf32, #tpu.memory_space<vmem>>, vector<1x8x16xf32>
    %3 = vector.shape_cast %2 : vector<1x8x16xf32> to vector<8x16xf32>
    %4 = arith.mulf %1, %3 : vector<8x16xf32>
    %c0_6 = arith.constant 0 : index
    %c1 = arith.constant 1 : index
    %c0_7 = arith.constant 0 : index
    %c0_8 = arith.constant 0 : index
    %5 = vector.load %arg1[%c0_6, %c1, %c0_7, %c0_8] : memref<1x4x8x16xf32, #tpu.memory_space<vmem>>, vector<1x1x8x16xf32>
    %6 = vector.shape_cast %5 : vector<1x1x8x16xf32> to vector<8x16xf32>
    %c1_9 = arith.constant 1 : index
    %c0_10 = arith.constant 0 : index
    %c0_11 = arith.constant 0 : index
    %7 = vector.load %arg2[%c1_9, %c0_10, %c0_11] : memref<4x8x16xf32, #tpu.memory_space<vmem>>, vector<1x8x16xf32>
    %8 = vector.shape_cast %7 : vector<1x8x16xf32> to vector<8x16xf32>
    %9 = arith.mulf %6, %8 : vector<8x16xf32>
    %10 = arith.addf %4, %9 : vector<8x16xf32>
    %c0_12 = arith.constant 0 : index
    %c2 = arith.constant 2 : index
    %c0_13 = arith.constant 0 : index
    %c0_14 = arith.constant 0 : index
    %11 = vector.load %arg1[%c0_12, %c2, %c0_13, %c0_14] : memref<1x4x8x16xf32, #tpu.memory_space<vmem>>, vector<1x1x8x16xf32>
    %12 = vector.shape_cast %11 : vector<1x1x8x16xf32> to vector<8x16xf32>
    %c2_15 = arith.constant 2 : index
    %c0_16 = arith.constant 0 : index
    %c0_17 = arith.constant 0 : index
    %13 = vector.load %arg2[%c2_15, %c0_16, %c0_17] : memref<4x8x16xf32, #tpu.memory_space<vmem>>, vector<1x8x16xf32>
    %14 = vector.shape_cast %13 : vector<1x8x16xf32> to vector<8x16xf32>
    %15 = arith.mulf %12, %14 : vector<8x16xf32>
    %16 = arith.addf %10, %15 : vector<8x16xf32>
    %c0_18 = arith.constant 0 : index
    %c3 = arith.constant 3 : index
    %c0_19 = arith.constant 0 : index
    %c0_20 = arith.constant 0 : index
    %17 = vector.load %arg1[%c0_18, %c3, %c0_19, %c0_20] : memref<1x4x8x16xf32, #tpu.memory_space<vmem>>, vector<1x1x8x16xf32>
    %18 = vector.shape_cast %17 : vector<1x1x8x16xf32> to vector<8x16xf32>
    %c3_21 = arith.constant 3 : index
    %c0_22 = arith.constant 0 : index
    %c0_23 = arith.constant 0 : index
    %19 = vector.load %arg2[%c3_21, %c0_22, %c0_23] : memref<4x8x16xf32, #tpu.memory_space<vmem>>, vector<1x8x16xf32>
    %20 = vector.shape_cast %19 : vector<1x8x16xf32> to vector<8x16xf32>
    %21 = arith.mulf %18, %20 : vector<8x16xf32>
    %22 = arith.addf %16, %21 : vector<8x16xf32>
    %c0_24 = arith.constant 0 : index
    %c0_25 = arith.constant 0 : index
    %23 = vector.load %arg3[%c0_24, %c0_25] : memref<8x8xbf16, #tpu.memory_space<vmem>>, vector<8x8xbf16>
    %c0_26 = arith.constant 0 : index
    %c0_27 = arith.constant 0 : index
    %24 = vector.load %arg4[%c0_26, %c0_27] : memref<16x32xbf16, #tpu.memory_space<vmem>>, vector<16x32xbf16>
    %c0_28 = arith.constant 0 : index
    %c0_29 = arith.constant 0 : index
    %25 = vector.load %arg5[%c0_28, %c0_29] : memref<1x32xf32, #tpu.memory_space<vmem>>, vector<1x32xf32>
    %26 = arith.truncf %22 : vector<8x16xf32> to vector<8x16xbf16>
    %cst = arith.constant dense<0.000000e+00> : vector<8x32xf32>
    %27 = tpu.matmul %26, %24, %cst {dimension_numbers = #tpu.dot_dimension_numbers<[1], [0], [0], [1], [0, 0, 1, 1], [], []>} : vector<8x16xbf16>, vector<16x32xbf16>, vector<8x32xf32> -> vector<8x32xf32>
    %28 = arith.truncf %27 : vector<8x32xf32> to vector<8x32xbf16>
    %cst_30 = arith.constant dense<0.000000e+00> : vector<8x32xf32>
    %29 = tpu.matmul %23, %28, %cst_30 {dimension_numbers = #tpu.dot_dimension_numbers<[1], [0], [0], [1], [0, 0, 1, 1], [], []>} : vector<8x8xbf16>, vector<8x32xbf16>, vector<8x32xf32> -> vector<8x32xf32>
    %30 = vector.broadcast %25 : vector<1x32xf32> to vector<8x32xf32>
    %31 = arith.addf %29, %30 : vector<8x32xf32>
    %32 = math.tanh %31 : vector<8x32xf32>
    %c0_31 = arith.constant 0 : index
    %c0_32 = arith.constant 0 : index
    %33 = vector.load %arg6[%c0_31, %c0_32] : memref<32x32xbf16, #tpu.memory_space<vmem>>, vector<32x32xbf16>
    %c0_33 = arith.constant 0 : index
    %c0_34 = arith.constant 0 : index
    %34 = vector.load %arg7[%c0_33, %c0_34] : memref<1x32xf32, #tpu.memory_space<vmem>>, vector<1x32xf32>
    %35 = arith.truncf %32 : vector<8x32xf32> to vector<8x32xbf16>
    %cst_35 = arith.constant dense<0.000000e+00> : vector<8x32xf32>
    %36 = tpu.matmul %35, %33, %cst_35 {dimension_numbers = #tpu.dot_dimension_numbers<[1], [0], [0], [1], [0, 0, 1, 1], [], []>} : vector<8x32xbf16>, vector<32x32xbf16>, vector<8x32xf32> -> vector<8x32xf32>
    %37 = arith.truncf %36 : vector<8x32xf32> to vector<8x32xbf16>
    %cst_36 = arith.constant dense<0.000000e+00> : vector<8x32xf32>
    %38 = tpu.matmul %23, %37, %cst_36 {dimension_numbers = #tpu.dot_dimension_numbers<[1], [0], [0], [1], [0, 0, 1, 1], [], []>} : vector<8x8xbf16>, vector<8x32xbf16>, vector<8x32xf32> -> vector<8x32xf32>
    %39 = vector.broadcast %34 : vector<1x32xf32> to vector<8x32xf32>
    %40 = arith.addf %38, %39 : vector<8x32xf32>
    %41 = math.tanh %40 : vector<8x32xf32>
    %c0_37 = arith.constant 0 : index
    %c0_38 = arith.constant 0 : index
    %c0_39 = arith.constant 0 : index
    %42 = vector.load %arg8[%c0_37, %c0_38, %c0_39] : memref<1x8x32xf32, #tpu.memory_space<vmem>>, vector<1x8x32xf32>
    %43 = vector.shape_cast %42 : vector<1x8x32xf32> to vector<8x32xf32>
    %44 = vector.shape_cast %41 : vector<8x32xf32> to vector<1x8x32xf32>
    tpu.vector_store %arg8[%c0_37, %c0_38, %c0_39], %44 {strides = array<i32>} : memref<1x8x32xf32, #tpu.memory_space<vmem>>, vector<1x8x32xf32>,
    return
  }
  func.func @transform_0(%arg0: i32) -> (i32, i32, i32, i32) {
    %c0_i32 = arith.constant 0 : i32
    %c0_i32_0 = arith.constant 0 : i32
    %c0_i32_1 = arith.constant 0 : i32
    %c0_i32_2 = arith.constant 0 : i32
    return %arg0, %c0_i32, %c0_i32_0, %c0_i32_1 : i32, i32, i32, i32
  }
  func.func @transform_1(%arg0: i32) -> (i32, i32, i32) {
    %c0_i32 = arith.constant 0 : i32
    %c0_i32_0 = arith.constant 0 : i32
    %c0_i32_1 = arith.constant 0 : i32
    %c0_i32_2 = arith.constant 0 : i32
    return %c0_i32, %c0_i32_0, %c0_i32_1 : i32, i32, i32
  }
  func.func @transform_2(%arg0: i32) -> (i32, i32) {
    %c0_i32 = arith.constant 0 : i32
    %c0_i32_0 = arith.constant 0 : i32
    %c0_i32_1 = arith.constant 0 : i32
    return %c0_i32, %c0_i32_0 : i32, i32
  }
  func.func @transform_3(%arg0: i32) -> (i32, i32) {
    %c0_i32 = arith.constant 0 : i32
    %c0_i32_0 = arith.constant 0 : i32
    %c0_i32_1 = arith.constant 0 : i32
    return %c0_i32, %c0_i32_0 : i32, i32
  }
  func.func @transform_4(%arg0: i32) -> (i32, i32) {
    %c0_i32 = arith.constant 0 : i32
    %c0_i32_0 = arith.constant 0 : i32
    %c0_i32_1 = arith.constant 0 : i32
    return %c0_i32, %c0_i32_0 : i32, i32
  }
  func.func @transform_5(%arg0: i32) -> (i32, i32) {
    %c0_i32 = arith.constant 0 : i32
    %c0_i32_0 = arith.constant 0 : i32
    %c0_i32_1 = arith.constant 0 : i32
    return %c0_i32, %c0_i32_0 : i32, i32
  }
  func.func @transform_6(%arg0: i32) -> (i32, i32) {
    %c0_i32 = arith.constant 0 : i32
    %c0_i32_0 = arith.constant 0 : i32
    %c0_i32_1 = arith.constant 0 : i32
    return %c0_i32, %c0_i32_0 : i32, i32
  }
  func.func @transform_7(%arg0: i32) -> (i32, i32, i32) {
    %c0_i32 = arith.constant 0 : i32
    %c0_i32_0 = arith.constant 0 : i32
    %c0_i32_1 = arith.constant 0 : i32
    return %arg0, %c0_i32, %c0_i32_0 : i32, i32, i32
  }
}

</mosaic_0001>

<llo_original>
// kernel: tpu_custom_call.1
$region0: #{tpu_custom_call.1}
  #allocation0 [shape = 'u32[]', space=smem, size = 0x4, offset = 0x4, fixed_abs, tag = 'smem constant byte address 0x4 - core index']
  #allocation1 [shape = 'u32[144,128]{1,0:T(1,128)}', space=vmem, size = 0x12000, scoped, tag = 'internal scratch']
  %s0 = inlined_call_operand.hbm [shape: f32[2,4,8,16], index: 0, kind: input, shape index: {}]
  %s1 = inlined_call_operand.hbm [shape: f32[4,8,16], index: 1, kind: input, shape index: {}]
  %s2 = inlined_call_operand.hbm [shape: bf16[8,8], index: 2, kind: input, shape index: {}]
  %s3 = inlined_call_operand.hbm [shape: bf16[16,32], index: 3, kind: input, shape index: {}]
  %s4 = inlined_call_operand.vmem [shape: f32[1,32], index: 4, kind: input, shape index: {}]
  %s5 = inlined_call_operand.vmem [shape: bf16[32,32], index: 5, kind: input, shape index: {}]
  %s6 = inlined_call_operand.vmem [shape: f32[1,32], index: 6, kind: input, shape index: {}]
  %s7 = inlined_call_operand.hbm [shape: f32[2,8,32], index: 7, kind: output, shape index: {}]
  %s8 = sld [smem:[#allocation0]]
  $region77: #{tpu_custom_call.1} parent=0
    _
  %s10 = ssub.s32 1, %s8
  %s11 = scalar_select 0, %s10, %s8
  $region1: #{tpu_custom_call.1} parent=0
    #allocation2 [shape = 'u8[32768]{0}', space=vmem, size = 0x8000, scoped, tag = 'input window, operand 0']
    #allocation3 [shape = 's32[2]{0}', space=sflag, size = 0x8, scoped, tag = 'scoped memory for tpu_custom_call.1']
    #allocation4 [shape = 's32[2]{0}', space=sflag, size = 0x8, scoped, tag = 'scoped memory for tpu_custom_call.1']
    #allocation5 [shape = 'u8[16384]{0}', space=vmem, size = 0x4000, scoped, tag = 'input window, operand 1, single buffered']
    #allocation6 [shape = 's32[1]{0}', space=sflag, size = 0x4, scoped, tag = 'scoped memory for tpu_custom_call.1']
    #allocation7 [shape = 'u8[2048]{0}', space=vmem, size = 0x800, scoped, tag = 'input window, operand 2, single buffered']
    #allocation8 [shape = 'u8[4096]{0}', space=vmem, size = 0x1000, scoped, tag = 'input window, operand 3, single buffered']
    #allocation9 [shape = 's32[1]{0}', space=sflag, size = 0x4, scoped, tag = 'scoped memory for tpu_custom_call.1']
    #allocation10 [shape = 'u8[8192]{0}', space=vmem, size = 0x2000, scoped, tag = 'output window, operand 0']
    %12 = vsyncpa [#allocation3], 0
    %s13 = scalar_lea.sflag [#allocation3], 1
    %14 = vsyncpa %s13, 0
    %15 = vsyncpa [#allocation6], 0
    %16 = vsyncpa [#allocation9], 0
    %17 = vsyncpa [#allocation4], 0
    %s18 = scalar_lea.sflag [#allocation4], 1
    %19 = vsyncpa %s18, 0
    loop: start=0, step=1, limit=4
    $region2: #{tpu_custom_call.1} parent=1 // loop_pre_header
      _
    $region3: #{tpu_custom_call.1} parent=1 // loop_header
      %s21 = sphi 0, %s25
      %p22 = scmp.ge.s32.totalorder %s21, 4
      %s31 = sphi 0, %s33
      %s34 = sphi 0, %s31
      %s35 = sphi 0, %s34
      %s51 = sphi 0, %s35
      %s55 = sphi 0, %s55
      %s57 = sphi 0, %s55
      %s58 = sphi 0, %s57
      %s72 = sphi 0, %s58
      %s76 = sphi 0, %s76
      %s78 = sphi 0, %s76
      %s79 = sphi 0, %s78
      %s93 = sphi 0, %s79
      %s97 = sphi 0, %s97
      %s99 = sphi 0, %s97
      %s100 = sphi 0, %s99
      %s114 = sphi 0, %s100
      %s118 = sphi 0, %s118
      %s120 = sphi 0, %s118
      %s121 = sphi 0, %s120
      %s135 = sphi 0, %s121
      %s139 = sphi 0, %s139
      %s141 = sphi 0, %s139
      %s142 = sphi 0, %s141
      %s156 = sphi 0, %s142
      %s160 = sphi 0, %s160
      %s162 = sphi 0, %s160
      %s163 = sphi 0, %s162
      %s177 = sphi 0, %s163
      %s183 = sphi 0, %s185
      %s186 = sphi 0, %s183
      %s187 = sphi 0, %s186
      %s203 = sphi 0, %s187
    $region4: #{tpu_custom_call.1} parent=1 // loop_header_branch
      %24 = sbr.rel (%p22) target = $region8
    $region5: #{tpu_custom_call.1} parent=1 // loop_body
      %s26 = ssub.s32 %s21, 1
      %s27 = ssub.s32 %s21, 2
      %s28 = sadd.s32 %s21, 1
      %s29 = ssub.s32 %s21, %s28
      %p30 = scmp.eq.s32.totalorder %s29, 0
      %s32 = sadd.s32 %s31, 1
      %s33 = scalar_select %p30, %s31, %s32
      %p36 = pneg %p30
      %p37 = scmp.eq.s32.totalorder %s21, 1
      %p38 = por %p36, %p37
      %p39 = scmp.ne.s32.totalorder %s31, %s34
      %p40 = scmp.eq.s32.totalorder %s21, 0
      %p41 = por %p39, %p40
      %p42 = scmp.ne.s32.totalorder %s31, %s34
      %p43 = scmp.eq.s32.totalorder %s26, 1
      %p44 = por %p42, %p43
      %p45 = scmp.ne.s32.totalorder %s34, %s35
      %p46 = scmp.eq.s32.totalorder %s26, 0
      %p47 = por %p45, %p46
      %p48 = scmp.ne.s32.totalorder %s34, %s35
      %p49 = scmp.eq.s32.totalorder %s27, 1
      %p50 = por %p48, %p49
      %p52 = scmp.ne.s32.totalorder %s35, %s51
      %p53 = scmp.eq.s32.totalorder %s27, 0
      %p54 = por %p52, %p53
      %s56 = sadd.s32 %s55, 1
      %p59 = scmp.eq.s32.totalorder %s21, 1
      %p60 = scmp.ne.s32.totalorder %s55, %s57
      %p61 = scmp.eq.s32.totalorder %s21, 0
      %p62 = por %p60, %p61
      %p63 = scmp.ne.s32.totalorder %s55, %s57
      %p64 = scmp.eq.s32.totalorder %s26, 1
      %p65 = por %p63, %p64
      %p66 = scmp.ne.s32.totalorder %s57, %s58
      %p67 = scmp.eq.s32.totalorder %s26, 0
      %p68 = por %p66, %p67
      %p69 = scmp.ne.s32.totalorder %s57, %s58
      %p70 = scmp.eq.s32.totalorder %s27, 1
      %p71 = por %p69, %p70
      %p73 = scmp.ne.s32.totalorder %s58, %s72
      %p74 = scmp.eq.s32.totalorder %s27, 0
      %p75 = por %p73, %p74
      %s77 = sadd.s32 %s76, 1
      %p80 = scmp.eq.s32.totalorder %s21, 1
      %p81 = scmp.ne.s32.totalorder %s76, %s78
      %p82 = scmp.eq.s32.totalorder %s21, 0
      %p83 = por %p81, %p82
      %p84 = scmp.ne.s32.totalorder %s76, %s78
      %p85 = scmp.eq.s32.totalorder %s26, 1
      %p86 = por %p84, %p85
      %p87 = scmp.ne.s32.totalorder %s78, %s79
      %p88 = scmp.eq.s32.totalorder %s26, 0
      %p89 = por %p87, %p88
      %p90 = scmp.ne.s32.totalorder %s78, %s79
      %p91 = scmp.eq.s32.totalorder %s27, 1
      %p92 = por %p90, %p91
      %p94 = scmp.ne.s32.totalorder %s79, %s93
      %p95 = scmp.eq.s32.totalorder %s27, 0
      %p96 = por %p94, %p95
      %s98 = sadd.s32 %s97, 1
      %p101 = scmp.eq.s32.totalorder %s21, 1
      %p102 = scmp.ne.s32.totalorder %s97, %s99
      %p103 = scmp.eq.s32.totalorder %s21, 0
      %p104 = por %p102, %p103
      %p105 = scmp.ne.s32.totalorder %s97, %s99
      %p106 = scmp.eq.s32.totalorder %s26, 1
      %p107 = por %p105, %p106
      %p108 = scmp.ne.s32.totalorder %s99, %s100
      %p109 = scmp.eq.s32.totalorder %s26, 0
      %p110 = por %p108, %p109
      %p111 = scmp.ne.s32.totalorder %s99, %s100
      %p112 = scmp.eq.s32.totalorder %s27, 1
      %p113 = por %p111, %p112
      %p115 = scmp.ne.s32.totalorder %s100, %s114
      %p116 = scmp.eq.s32.totalorder %s27, 0
      %p117 = por %p115, %p116
      %s119 = sadd.s32 %s118, 1
      %p122 = scmp.eq.s32.totalorder %s21, 1
      %p123 = scmp.ne.s32.totalorder %s118, %s120
      %p124 = scmp.eq.s32.totalorder %s21, 0
      %p125 = por %p123, %p124
      %p126 = scmp.ne.s32.totalorder %s118, %s120
      %p127 = scmp.eq.s32.totalorder %s26, 1
      %p128 = por %p126, %p127
      %p129 = scmp.ne.s32.totalorder %s120, %s121
      %p130 = scmp.eq.s32.totalorder %s26, 0
      %p131 = por %p129, %p130
      %p132 = scmp.ne.s32.totalorder %s120, %s121
      %p133 = scmp.eq.s32.totalorder %s27, 1
      %p134 = por %p132, %p133
      %p136 = scmp.ne.s32.totalorder %s121, %s135
      %p137 = scmp.eq.s32.totalorder %s27, 0
      %p138 = por %p136, %p137
      %s140 = sadd.s32 %s139, 1
      %p143 = scmp.eq.s32.totalorder %s21, 1
      %p144 = scmp.ne.s32.totalorder %s139, %s141
      %p145 = scmp.eq.s32.totalorder %s21, 0
      %p146 = por %p144, %p145
      %p147 = scmp.ne.s32.totalorder %s139, %s141
      %p148 = scmp.eq.s32.totalorder %s26, 1
      %p149 = por %p147, %p148
      %p150 = scmp.ne.s32.totalorder %s141, %s142
      %p151 = scmp.eq.s32.totalorder %s26, 0
      %p152 = por %p150, %p151
      %p153 = scmp.ne.s32.totalorder %s141, %s142
      %p154 = scmp.eq.s32.totalorder %s27, 1
      %p155 = por %p153, %p154
      %p157 = scmp.ne.s32.totalorder %s142, %s156
      %p158 = scmp.eq.s32.totalorder %s27, 0
      %p159 = por %p157, %p158
      %s161 = sadd.s32 %s160, 1
      %p164 = scmp.eq.s32.totalorder %s21, 1
      %p165 = scmp.ne.s32.totalorder %s160, %s162
      %p166 = scmp.eq.s32.totalorder %s21, 0
      %p167 = por %p165, %p166
      %p168 = scmp.ne.s32.totalorder %s160, %s162
      %p169 = scmp.eq.s32.totalorder %s26, 1
      %p170 = por %p168, %p169
      %p171 = scmp.ne.s32.totalorder %s162, %s163
      %p172 = scmp.eq.s32.totalorder %s26, 0
      %p173 = por %p171, %p172
      %p174 = scmp.ne.s32.totalorder %s162, %s163
      %p175 = scmp.eq.s32.totalorder %s27, 1
      %p176 = por %p174, %p175
      %p178 = scmp.ne.s32.totalorder %s163, %s177
      %p179 = scmp.eq.s32.totalorder %s27, 0
      %p180 = por %p178, %p179
      %s181 = ssub.s32 %s21, %s28
      %p182 = scmp.eq.s32.totalorder %s181, 0
      %s184 = sadd.s32 %s183, 1
      %s185 = scalar_select %p182, %s183, %s184
      %p188 = pneg %p182
      %p189 = scmp.eq.s32.totalorder %s21, 1
      %p190 = por %p188, %p189
      %p191 = scmp.ne.s32.totalorder %s183, %s186
      %p192 = scmp.eq.s32.totalorder %s21, 0
      %p193 = por %p191, %p192
      %p194 = scmp.ne.s32.totalorder %s183, %s186
      %p195 = scmp.eq.s32.totalorder %s26, 1
      %p196 = por %p194, %p195
      %p197 = scmp.ne.s32.totalorder %s186, %s187
      %p198 = scmp.eq.s32.totalorder %s26, 0
      %p199 = por %p197, %p198
      %p200 = scmp.ne.s32.totalorder %s186, %s187
      %p201 = scmp.eq.s32.totalorder %s27, 1
      %p202 = por %p200, %p201
      %p204 = scmp.ne.s32.totalorder %s187, %s203
      %p205 = scmp.eq.s32.totalorder %s27, 0
      %p206 = por %p204, %p205
      %p207 = scmp.le.s32.totalorder 1, %s21
      %p208 = scmp.lt.s32.totalorder %s21, 3
      %p209 = pnand %p207, %p208
      %p210 = pneg %p209
      // Predicated region
      $region9: #{tpu_custom_call.1} parent=5 // pred_check
        _
      $region10: #{tpu_custom_call.1} parent=5 // pred_check_branch
        %212 = sbr.rel (%p209) target = $region12
      $region11: #{tpu_custom_call.1} parent=5 // pred_region
        %s213 = ssub.s32 %s21, 1
        // Predicated region
        $region13: #{tpu_custom_call.1} parent=11 // pred_check
          %p214 = pneg %p68
        $region14: #{tpu_custom_call.1} parent=11 // pred_check_branch
          %216 = sbr.rel (%p214) target = $region16
        $region15: #{tpu_custom_call.1} parent=11 // pred_region
          %s218 = ssub.s32 512, 512
          %219 = vsyncadd [#allocation6], %s218
          %s220 = sshll.u32 [#allocation5], 4
          %s221 = int_to_ptr.vmem [resolvable:$true] %s220
          %226 = dma.hbm_to_vmem [thread:$0]  %s1, 512, %s221, [#allocation6], 128, 128, 8
        $region16: #{tpu_custom_call.1} parent=11 // pred_fallthru
          _
        // Predicated region
        $region17: #{tpu_custom_call.1} parent=11 // pred_check
          %p227 = pneg %p89
        $region18: #{tpu_custom_call.1} parent=11 // pred_check_branch
          %229 = sbr.rel (%p227) target = $region20
        $region19: #{tpu_custom_call.1} parent=11 // pred_region
          %s231 = ssub.s32 64, 64
          %232 = vsyncadd [#allocation6], %s231
          %s234 = sshll.u32 [#allocation7], 4
          %s235 = int_to_ptr.vmem [resolvable:$true] %s234
          %237 = dma.hbm_to_vmem [thread:$0]  %s2, 64, %s235, [#allocation6]
        $region20: #{tpu_custom_call.1} parent=11 // pred_fallthru
          _
        // Predicated region
        $region21: #{tpu_custom_call.1} parent=11 // pred_check
          %p238 = pneg %p110
        $region22: #{tpu_custom_call.1} parent=11 // pred_check_branch
          %240 = sbr.rel (%p238) target = $region24
        $region23: #{tpu_custom_call.1} parent=11 // pred_region
          %s242 = ssub.s32 128, 128
          %243 = vsyncadd [#allocation9], %s242
          %s244 = sshll.u32 [#allocation8], 4
          %s245 = int_to_ptr.vmem [resolvable:$true] %s244
          %250 = dma.hbm_to_vmem [thread:$0]  %s3, 128, %s245, [#allocation9], 64, 64, 4
        $region24: #{tpu_custom_call.1} parent=11 // pred_fallthru
          _
        // Predicated region
        $region25: #{tpu_custom_call.1} parent=11 // pred_check
          %p251 = pneg %p131
        $region26: #{tpu_custom_call.1} parent=11 // pred_check_branch
          %253 = sbr.rel (%p251) target = $region28
        $region27: #{tpu_custom_call.1} parent=11 // pred_region
          _
        $region28: #{tpu_custom_call.1} parent=11 // pred_fallthru
          _
        // Predicated region
        $region29: #{tpu_custom_call.1} parent=11 // pred_check
          %p254 = pneg %p152
        $region30: #{tpu_custom_call.1} parent=11 // pred_check_branch
          %256 = sbr.rel (%p254) target = $region32
        $region31: #{tpu_custom_call.1} parent=11 // pred_region
          _
        $region32: #{tpu_custom_call.1} parent=11 // pred_fallthru
          _
        // Predicated region
        $region33: #{tpu_custom_call.1} parent=11 // pred_check
          %p257 = pneg %p173
        $region34: #{tpu_custom_call.1} parent=11 // pred_check_branch
          %259 = sbr.rel (%p257) target = $region36
        $region35: #{tpu_custom_call.1} parent=11 // pred_region
          _
        $region36: #{tpu_custom_call.1} parent=11 // pred_fallthru
          _
      $region12: #{tpu_custom_call.1} parent=5 // pred_fallthru
        _
      %p260 = scmp.lt.s32.totalorder %s21, 2
      // Predicated region
      $region37: #{tpu_custom_call.1} parent=5 // pred_check
        %p261 = pneg %p260
      $region38: #{tpu_custom_call.1} parent=5 // pred_check_branch
        %263 = sbr.rel (%p261) target = $region40
      $region39: #{tpu_custom_call.1} parent=5 // pred_region
        // Predicated region
        $region41: #{tpu_custom_call.1} parent=39 // pred_check
          %p264 = pneg %p41
        $region42: #{tpu_custom_call.1} parent=39 // pred_check_branch
          %266 = sbr.rel (%p264) target = $region44
        $region43: #{tpu_custom_call.1} parent=39 // pred_region
          %s267 = sand.u32 %s31, 1
          %s268 = scalar_lea.sflag [#allocation3], %s267
          %s269 = sand.u32 %s31, 1
          %s270 = smul.addr %s269, 32
          %s271 = scalar_lea.vmem [#allocation2], %s270
          %s273 = ssub.s32 512, 512
          %274 = vsyncadd %s268, %s273
          %s275 = smul.addr %s21, 4
          %s276 = smul.addr %s275, 128
          %s277 = scalar_lea.hbm %s0, %s276
          %s278 = sshll.u32 %s271, 4
          %s279 = int_to_ptr.vmem [resolvable:$true] %s278
          %284 = dma.hbm_to_vmem [thread:$0]  %s277, 512, %s279, %s268, 128, 128, 8
        $region44: #{tpu_custom_call.1} parent=39 // pred_fallthru
          _
      $region40: #{tpu_custom_call.1} parent=5 // pred_fallthru
        _
      %p285 = scmp.le.s32.totalorder 1, %s21
      %p286 = scmp.lt.s32.totalorder %s21, 3
      %p287 = pnand %p285, %p286
      %p288 = pneg %p287
      // Predicated region
      $region45: #{tpu_custom_call.1} parent=5 // pred_check
        _
      $region46: #{tpu_custom_call.1} parent=5 // pred_check_branch
        %290 = sbr.rel (%p287) target = $region48
      $region47: #{tpu_custom_call.1} parent=5 // pred_region
        %s291 = ssub.s32 %s21, 1
        %s292 = sand.u32 %s34, 1
        %s293 = scalar_lea.sflag [#allocation3], %s292
        %s294 = sand.u32 %s34, 1
        %s295 = smul.addr %s294, 32
        %s296 = scalar_lea.vmem [#allocation2], %s295
        // Predicated region
        $region49: #{tpu_custom_call.1} parent=47 // pred_check
          %p297 = pneg %p47
        $region50: #{tpu_custom_call.1} parent=47 // pred_check_branch
          %299 = sbr.rel (%p297) target = $region52
        $region51: #{tpu_custom_call.1} parent=47 // pred_region
          %300 = dma.done %s293, 512
        $region52: #{tpu_custom_call.1} parent=47 // pred_fallthru
          _
        // Predicated region
        $region53: #{tpu_custom_call.1} parent=47 // pred_check
          %p301 = pneg %p68
        $region54: #{tpu_custom_call.1} parent=47 // pred_check_branch
          %303 = sbr.rel (%p301) target = $region56
        $region55: #{tpu_custom_call.1} parent=47 // pred_region
          %304 = dma.done [#allocation6], 512
        $region56: #{tpu_custom_call.1} parent=47 // pred_fallthru
          _
        // Predicated region
        $region57: #{tpu_custom_call.1} parent=47 // pred_check
          %p305 = pneg %p89
        $region58: #{tpu_custom_call.1} parent=47 // pred_check_branch
          %307 = sbr.rel (%p305) target = $region60
        $region59: #{tpu_custom_call.1} parent=47 // pred_region
          %308 = dma.done [#allocation6], 64
        $region60: #{tpu_custom_call.1} parent=47 // pred_fallthru
          _
        // Predicated region
        $region61: #{tpu_custom_call.1} parent=47 // pred_check
          %p309 = pneg %p110
        $region62: #{tpu_custom_call.1} parent=47 // pred_check_branch
          %311 = sbr.rel (%p309) target = $region64
        $region63: #{tpu_custom_call.1} parent=47 // pred_region
          %312 = dma.done [#allocation9], 128
        $region64: #{tpu_custom_call.1} parent=47 // pred_fallthru
          _
        %s313 = sand.u32 %s34, 1
        %s314 = scalar_lea.sflag [#allocation3], %s313
        %s315 = sand.u32 %s34, 1
        %s316 = smul.addr %s315, 32
        %s317 = scalar_lea.vmem [#allocation2], %s316
        %p318 = pneg %p47
        %p319 = pneg %p44
        %p320 = pneg %p68
        %p321 = pneg %p65
        %p322 = pneg %p89
        %p323 = pneg %p86
        %p324 = pneg %p110
        %p325 = pneg %p107
        %p326 = pneg %p131
        %p327 = pneg %p128
        %p328 = pneg %p152
        %p329 = pneg %p149
        %p330 = pneg %p173
        %p331 = pneg %p170
        %p332 = pneg %p199
        %p333 = pneg %p196
        %s334 = sand.u32 %s186, 1
        %s335 = scalar_lea.sflag [#allocation4], %s334
        %s336 = sand.u32 %s186, 1
        %s337 = smul.addr %s336, 8
        %s338 = scalar_lea.vmem [#allocation10], %s337
        %v340 = vld [vmem:[%s296] sm:$0xff]
        %v341 = vld [vmem:[#allocation5] sm:$0xff]
        %v342 = vmul.f32 %v340, %v341
        %s343 = scalar_lea.vmem %s296, 8 [#allocation2]
        %v344 = vld [vmem:[%s343] sm:$0xff]
        %s345 = scalar_lea.vmem [#allocation5], 8
        %v346 = vld [vmem:[%s345] sm:$0xff]
        %v347 = vmul.f32 %v344, %v346
        %v348 = vadd.f32 %v342, %v347
        %s349 = scalar_lea.vmem %s296, 16 [#allocation2]
        %v350 = vld [vmem:[%s349] sm:$0xff]
        %s351 = scalar_lea.vmem [#allocation5], 16
        %v352 = vld [vmem:[%s351] sm:$0xff]
        %v353 = vmul.f32 %v350, %v352
        %v354 = vadd.f32 %v348, %v353
        %s355 = scalar_lea.vmem %s296, 24 [#allocation2]
        %v356 = vld [vmem:[%s355] sm:$0xff]
        %s357 = scalar_lea.vmem [#allocation5], 24
        %v358 = vld [vmem:[%s357] sm:$0xff]
        %v359 = vmul.f32 %v356, %v358
        %v360 = vadd.f32 %v354, %v359
        %v361 = vld [vmem:[#allocation7] sm:$0xf]
        %v362 = vld [vmem:[#allocation8] sm:$0xf]
        %v363 = vld [vmem:[#allocation8 + $0x4] sm:$0xf]
        %v364 = vld [vmem:[%s4] sm:$0x1]
        %v365 = vpack.c.bf16 %v360, %v360
        %v368 = vunpack.c.l.b16 %v362
        %v369 = vunpack.c.l.b16 %v363
        %v370 = vpack.c.b16 %v369, %v368
        %vm372 = vcmask 130048
        %v374 = vsel %vm372, %v365, 0
        %376 = vmatprep.subr.bf16.mxu0 0
        %377 = vmatpush1.bf16.msra.mxu0 %v370
        %378 = vmatprep.subr.bf16.mxu0 0
        %379 = vmatpush1.bf16.msra.mxu0 0
        %380 = vmatprep.subr.bf16.mxu0 0
        %381 = vmatpush1.bf16.msra.mxu0 0
        %382 = vmatprep.subr.bf16.mxu0 0
        %383 = vmatpush1.bf16.msra.mxu0 0
        %384 = vmatprep.subr.bf16.mxu0 0
        %385 = vmatpush1.bf16.msra.mxu0 0
        %386 = vmatprep.subr.bf16.mxu0 0
        %387 = vmatpush1.bf16.msra.mxu0 0
        %388 = vmatprep.subr.bf16.mxu0 0
        %389 = vmatpush1.bf16.msra.mxu0 0
        %390 = vmatprep.subr.bf16.mxu0 0
        %391 = vmatpush1.bf16.msra.mxu0 0
        %392 = vmatprep.subr.bf16.mxu0 0
        %393 = vmatpush1.bf16.msra.mxu0 0
        %394 = vmatprep.subr.bf16.mxu0 0
        %395 = vmatpush1.bf16.msra.mxu0 0
        %396 = vmatprep.subr.bf16.mxu0 0
        %397 = vmatpush1.bf16.msra.mxu0 0
        %398 = vmatprep.subr.bf16.mxu0 0
        %399 = vmatpush1.bf16.msra.mxu0 0
        %400 = vmatprep.subr.bf16.mxu0 0
        %401 = vmatpush1.bf16.msra.mxu0 0
        %402 = vmatprep.subr.bf16.mxu0 0
        %403 = vmatpush1.bf16.msra.mxu0 0
        %404 = vmatprep.subr.bf16.mxu0 0
        %405 = vmatpush1.bf16.msra.mxu0 0
        %406 = vmatprep.subr.bf16.mxu0 0
        %407 = vmatpush1.bf16.msra.mxu0 0
        %408 = vmatprep.mubr.bf16.mxu0 0
        %409 = vmatmul.mubr.bf16.gmra.mrb[0].mxu0 %v374
        %v410 = vpop.f32.mrb[0].mxu0
        %v411 = vadd.f32 0.0, %v410
        %v412 = vpop.f32.mrb[0].mxu0
        %v413 = vpop.f32.mrb[0].mxu0
        %v414 = vpop.f32.mrb[0].mxu0
        %415 = vdwg.mxu0
        %v416 = vpack.c.bf16 %v411, %v411
        %v418 = vlaneseq
        %v419 = vshrl.u32 %v418, 7
        %v420 = vsub.s32 0, %v419
        %v421 = vrot.slane %v364, %v420
        %vm423 = vcmask 64512
        %v425 = vsel %vm423, %v361, 0
        %vm427 = vcmask 1043456
        %v429 = vsel %vm427, %v416, 0
        %431 = vmatprep.subr.bf16.mxu0 0
        %432 = vmatpush1.bf16.msra.mxu0 %v429
        %433 = vmatprep.subr.bf16.mxu0 0
        %434 = vmatpush1.bf16.msra.mxu0 0
        %435 = vmatprep.subr.bf16.mxu0 0
        %436 = vmatpush1.bf16.msra.mxu0 0
        %437 = vmatprep.subr.bf16.mxu0 0
        %438 = vmatpush1.bf16.msra.mxu0 0
        %439 = vmatprep.subr.bf16.mxu0 0
        %440 = vmatpush1.bf16.msra.mxu0 0
        %441 = vmatprep.subr.bf16.mxu0 0
        %442 = vmatpush1.bf16.msra.mxu0 0
        %443 = vmatprep.subr.bf16.mxu0 0
        %444 = vmatpush1.bf16.msra.mxu0 0
        %445 = vmatprep.subr.bf16.mxu0 0
        %446 = vmatpush1.bf16.msra.mxu0 0
        %447 = vmatprep.subr.bf16.mxu0 0
        %448 = vmatpush1.bf16.msra.mxu0 0
        %449 = vmatprep.subr.bf16.mxu0 0
        %450 = vmatpush1.bf16.msra.mxu0 0
        %451 = vmatprep.subr.bf16.mxu0 0
        %452 = vmatpush1.bf16.msra.mxu0 0
        %453 = vmatprep.subr.bf16.mxu0 0
        %454 = vmatpush1.bf16.msra.mxu0 0
        %455 = vmatprep.subr.bf16.mxu0 0
        %456 = vmatpush1.bf16.msra.mxu0 0
        %457 = vmatprep.subr.bf16.mxu0 0
        %458 = vmatpush1.bf16.msra.mxu0 0
        %459 = vmatprep.subr.bf16.mxu0 0
        %460 = vmatpush1.bf16.msra.mxu0 0
        %461 = vmatprep.subr.bf16.mxu0 0
        %462 = vmatpush1.bf16.msra.mxu0 0
        %463 = vmatprep.mubr.bf16.mxu0 0
        %464 = vmatmul.mubr.bf16.gmra.mrb[0].mxu0 %v425
        %v465 = vpop.f32.mrb[0].mxu0
        %v466 = vadd.f32 %v421, %v465
        %v467 = vpop.f32.mrb[0].mxu0
        %v468 = vpop.f32.mrb[0].mxu0
        %v469 = vpop.f32.mrb[0].mxu0
        %470 = vdwg.mxu0
        %v471 = vtanh.pop %v466
        %v472 = vld [vmem:[%s5] sm:$0xf]
        %v473 = vld [vmem:[%s5 + $0x4] sm:$0xf]
        %v474 = vld [vmem:[%s5 + $0x8] sm:$0xf]
        %v475 = vld [vmem:[%s5 + $0xc] sm:$0xf]
        %v476 = vld [vmem:[%s6] sm:$0x1]
        %v477 = vpack.c.bf16 %v471, %v471
        %v482 = vunpack.c.l.b16 %v472
        %v483 = vunpack.c.l.b16 %v473
        %v484 = vunpack.c.l.b16 %v474
        %v485 = vunpack.c.l.b16 %v475
        %v486 = vpack.c.b16 %v483, %v482
        %v487 = vpack.c.b16 %v485, %v484
        %vm490 = vcmask 261120
        %v492 = vsel %vm490, %v477, 0
        %494 = vmatprep.subr.bf16.mxu0 0
        %495 = vmatpush1.bf16.msra.mxu0 %v486
        %496 = vmatprep.subr.bf16.mxu0 0
        %497 = vmatpush1.bf16.msra.mxu0 %v487
        %498 = vmatprep.subr.bf16.mxu0 0
        %499 = vmatpush1.bf16.msra.mxu0 0
        %500 = vmatprep.subr.bf16.mxu0 0
        %501 = vmatpush1.bf16.msra.mxu0 0
        %502 = vmatprep.subr.bf16.mxu0 0
        %503 = vmatpush1.bf16.msra.mxu0 0
        %504 = vmatprep.subr.bf16.mxu0 0
        %505 = vmatpush1.bf16.msra.mxu0 0
        %506 = vmatprep.subr.bf16.mxu0 0
        %507 = vmatpush1.bf16.msra.mxu0 0
        %508 = vmatprep.subr.bf16.mxu0 0
        %509 = vmatpush1.bf16.msra.mxu0 0
        %510 = vmatprep.subr.bf16.mxu0 0
        %511 = vmatpush1.bf16.msra.mxu0 0
        %512 = vmatprep.subr.bf16.mxu0 0
        %513 = vmatpush1.bf16.msra.mxu0 0
        %514 = vmatprep.subr.bf16.mxu0 0
        %515 = vmatpush1.bf16.msra.mxu0 0
        %516 = vmatprep.subr.bf16.mxu0 0
        %517 = vmatpush1.bf16.msra.mxu0 0
        %518 = vmatprep.subr.bf16.mxu0 0
        %519 = vmatpush1.bf16.msra.mxu0 0
        %520 = vmatprep.subr.bf16.mxu0 0
        %521 = vmatpush1.bf16.msra.mxu0 0
        %522 = vmatprep.subr.bf16.mxu0 0
        %523 = vmatpush1.bf16.msra.mxu0 0
        %524 = vmatprep.subr.bf16.mxu0 0
        %525 = vmatpush1.bf16.msra.mxu0 0
        %526 = vmatprep.mubr.bf16.mxu0 0
        %527 = vmatmul.mubr.bf16.gmra.mrb[0].mxu0 %v492
        %v528 = vpop.f32.mrb[0].mxu0
        %v529 = vadd.f32 0.0, %v528
        %v530 = vpop.f32.mrb[0].mxu0
        %v531 = vpop.f32.mrb[0].mxu0
        %v532 = vpop.f32.mrb[0].mxu0
        %533 = vdwg.mxu0
        %v534 = vpack.c.bf16 %v529, %v529
        %v536 = vlaneseq
        %v537 = vshrl.u32 %v536, 7
        %v538 = vsub.s32 0, %v537
        %v539 = vrot.slane %v476, %v538
        %v542 = vsel %vm427, %v534, 0
        %544 = vmatprep.subr.bf16.mxu0 0
        %545 = vmatpush1.bf16.msra.mxu0 %v542
        %546 = vmatprep.subr.bf16.mxu0 0
        %547 = vmatpush1.bf16.msra.mxu0 0
        %548 = vmatprep.subr.bf16.mxu0 0
        %549 = vmatpush1.bf16.msra.mxu0 0
        %550 = vmatprep.subr.bf16.mxu0 0
        %551 = vmatpush1.bf16.msra.mxu0 0
        %552 = vmatprep.subr.bf16.mxu0 0
        %553 = vmatpush1.bf16.msra.mxu0 0
        %554 = vmatprep.subr.bf16.mxu0 0
        %555 = vmatpush1.bf16.msra.mxu0 0
        %556 = vmatprep.subr.bf16.mxu0 0
        %557 = vmatpush1.bf16.msra.mxu0 0
        %558 = vmatprep.subr.bf16.mxu0 0
        %559 = vmatpush1.bf16.msra.mxu0 0
        %560 = vmatprep.subr.bf16.mxu0 0
        %561 = vmatpush1.bf16.msra.mxu0 0
        %562 = vmatprep.subr.bf16.mxu0 0
        %563 = vmatpush1.bf16.msra.mxu0 0
        %564 = vmatprep.subr.bf16.mxu0 0
        %565 = vmatpush1.bf16.msra.mxu0 0
        %566 = vmatprep.subr.bf16.mxu0 0
        %567 = vmatpush1.bf16.msra.mxu0 0
        %568 = vmatprep.subr.bf16.mxu0 0
        %569 = vmatpush1.bf16.msra.mxu0 0
        %570 = vmatprep.subr.bf16.mxu0 0
        %571 = vmatpush1.bf16.msra.mxu0 0
        %572 = vmatprep.subr.bf16.mxu0 0
        %573 = vmatpush1.bf16.msra.mxu0 0
        %574 = vmatprep.subr.bf16.mxu0 0
        %575 = vmatpush1.bf16.msra.mxu0 0
        %576 = vmatprep.mubr.bf16.mxu0 0
        %577 = vmatmul.mubr.bf16.gmra.mrb[0].mxu0 %v425
        %v578 = vpop.f32.mrb[0].mxu0
        %v579 = vadd.f32 %v539, %v578
        %v580 = vpop.f32.mrb[0].mxu0
        %v581 = vpop.f32.mrb[0].mxu0
        %v582 = vpop.f32.mrb[0].mxu0
        %583 = vdwg.mxu0
        %v584 = vtanh.pop %v579
        %585 = vst.msk [vmem:[%s338] sm:$0xff] %vm490, %v584
        %s586 = sand.u32 %s186, 1
        %s587 = scalar_lea.sflag [#allocation4], %s586
        %s588 = sand.u32 %s186, 1
        %s589 = smul.addr %s588, 8
        %s590 = scalar_lea.vmem [#allocation10], %s589
        // Predicated region
        $region65: #{tpu_custom_call.1} parent=47 // pred_check
          %p591 = pneg %p196
        $region66: #{tpu_custom_call.1} parent=47 // pred_check_branch
          %593 = sbr.rel (%p591) target = $region68
        $region67: #{tpu_custom_call.1} parent=47 // pred_region
          %s595 = ssub.s32 128, 128
          %596 = vsyncadd %s587, %s595
          %s597 = smul.addr %s26, 128
          %s598 = scalar_lea.hbm %s7, %s597
          %s600 = sshll.u32 %s590, 4
          %s601 = int_to_ptr.vmem [resolvable:$true] %s600
          %603 = dma.vmem_to_hbm [thread:$0]  %s601, 128, %s598, %s587
        $region68: #{tpu_custom_call.1} parent=47 // pred_fallthru
          _
      $region48: #{tpu_custom_call.1} parent=5 // pred_fallthru
        _
      %p604 = scmp.le.s32.totalorder 2, %s21
      // Predicated region
      $region69: #{tpu_custom_call.1} parent=5 // pred_check
        %p605 = pneg %p604
      $region70: #{tpu_custom_call.1} parent=5 // pred_check_branch
        %607 = sbr.rel (%p605) target = $region72
      $region71: #{tpu_custom_call.1} parent=5 // pred_region
        %s608 = ssub.s32 %s21, 2
        // Predicated region
        $region73: #{tpu_custom_call.1} parent=71 // pred_check
          %p609 = pneg %p202
        $region74: #{tpu_custom_call.1} parent=71 // pred_check_branch
          %611 = sbr.rel (%p609) target = $region76
        $region75: #{tpu_custom_call.1} parent=71 // pred_region
          %s612 = sand.u32 %s187, 1
          %s613 = scalar_lea.sflag [#allocation4], %s612
          %s614 = sand.u32 %s187, 1
          %s615 = smul.addr %s614, 8
          %s616 = scalar_lea.vmem [#allocation10], %s615
          %617 = dma.done %s613, 128
        $region76: #{tpu_custom_call.1} parent=71 // pred_fallthru
          _
      $region72: #{tpu_custom_call.1} parent=5 // pred_fallthru
        _
    $region6: #{tpu_custom_call.1} parent=1 // loop_footer
      %s25 = sadd.s32 1, %s21
    $region7: #{tpu_custom_call.1} parent=1 // loop_footer_branch
      %20 = sbr.rel target = $region3
    $region8: #{tpu_custom_call.1} parent=1 // loop_exit
      _
    %618 = vsyncpa [#allocation3], 1
    %s619 = scalar_lea.sflag [#allocation3], 1
    %620 = vsyncpa %s619, 1
    %621 = vsyncpa [#allocation6], 1
    %622 = vsyncpa [#allocation9], 1
    %623 = vsyncpa [#allocation4], 1
    %s624 = scalar_lea.sflag [#allocation4], 1
    %625 = vsyncpa %s624, 1

</llo_original>
